<compile_context>
chip_gen: v5e
topology: v5e:2x2
jax: 0.10.0
libtpu: 0.0.40
codegen_flags: <defaults>
</compile_context>

<pallas_src>
import functools

import jax
import jax.numpy as jnp
import numpy as np
from jax.experimental import pallas as pl
from jax.experimental.pallas import tpu as pltpu


def _edge_index_kernel(base_ei_ref, ei_out_ref, *, num_nodes):
    """Offset the per-graph edge list by graph_id * num_nodes.

    base_ei_ref : (2, 1, m_blk)     int32  -- single-graph edge-list tile
    ei_out_ref  : (2, b_blk, m_blk) int32  -- edge tile for b_blk graphs
    """
    b_blk = ei_out_ref.shape[1]
    b_start = pl.program_id(1) * b_blk
    # Per-graph node offsets on a tiny (1, b_blk, 1) shape; the only full-tile
    # work is the single broadcast-add below (~1 VALU op / element).
    off = (b_start + jax.lax.broadcasted_iota(jnp.int32, (1, b_blk, 1), 1)) * num_nodes
    ei_out_ref[...] = base_ei_ref[...] + off


def _full_graph_edge_index(n, self_loop):
    """Single-graph edge list, matching torch.nonzero row-major order."""
    if self_loop:
        src = np.repeat(np.arange(n), n)
        dst = np.tile(np.arange(n), n)
    else:
        src = np.repeat(np.arange(n), n - 1)
        rem = np.tile(np.arange(n - 1), n)
        dst = rem + (rem >= src).astype(np.int64)
    return np.stack([src, dst]).astype(np.int32)  # [2, M]


def _choose_tiles(B, M):
    """Tile (b_blk, m_blk) for the (2, B, M) int32 edge-index output.

    HBM-write-bound streaming store: target ~4 MiB output blocks so per-grid
    step overhead is amortized, while double-buffered output VMEM (2 x block
    = ~8 MiB) stays far under the v7x scoped budget. m_blk is full-extent or a
    multiple of 128 so stores stay unmasked except on the final tail tile.
    """
    b_blk = B if B <= 64 else 64
    target_m = max(128, (4 * 1024 * 1024) // (2 * b_blk * 4))
    if M <= target_m:
        m_blk = M
        # v7x has 2 TensorCores: if one block would swallow a non-trivial
        # array, split the m axis so both cores get a "parallel" block.
        if b_blk == B and M >= 256 and 2 * B * M * 4 > (1 << 21):
            m_blk = -(-((M + 1) // 2) // 128) * 128  # ~M/2 rounded up to 128
    else:
        m_blk = (target_m // 128) * 128
    return b_blk, m_blk


def _edge_index_pallas(base_ei_np, B, N, M):
    # (2, 1, M): layout already matches the output's (sublane=b, lane=m) tiling,
    # so the in-kernel add is a pure sublane-broadcast (no per-block retile).
    base_ei = jnp.asarray(base_ei_np).reshape(2, 1, M)

    b_blk, m_blk = _choose_tiles(B, M)
    # m outermost: the base_ei input block index is constant across the inner
    # b loop, so Pallas fetches each m-tile of base_ei exactly once.
    grid = (pl.cdiv(M, m_blk), pl.cdiv(B, b_blk))

    kernel = functools.partial(_edge_index_kernel, num_nodes=N)
    bytes_accessed = 2 * M * 4 + 2 * B * M * 4  # read base_ei once + write output

    ei_out = pl.pallas_call(
        kernel,
        out_shape=jax.ShapeDtypeStruct((2, B, M), jnp.int32),
        grid_spec=pltpu.PrefetchScalarGridSpec(
            num_scalar_prefetch=0,
            grid=grid,
            in_specs=[pl.BlockSpec((2, 1, m_blk), lambda mi, bi: (0, 0, mi))],
            out_specs=pl.BlockSpec((2, b_blk, m_blk), lambda mi, bi: (0, bi, mi)),
        ),
        compiler_params=pltpu.CompilerParams(
            dimension_semantics=("parallel", "parallel"),
            # Load-bearing on v5e (16 MiB default scoped VMEM); plenty of
            # headroom for ~8 MiB of double-buffered output on v6e/v7x.
            vmem_limit_bytes=32 * 1024 * 1024,
        ),
        cost_estimate=pl.CostEstimate(
            flops=0, transcendentals=0, bytes_accessed=bytes_accessed
        ),
    )(base_ei)

    # (2, B, M) -> (2, B*M): merge of trailing contiguous dims, free bitcast.
    return ei_out.reshape(2, B * M)


def no_edge_embedding(init_embeddings, self_loop=False):
    """Pallas/JAX equivalent of NoEdgeEmbedding.forward (returns a dict)."""
    B, N, D = init_embeddings.shape
    dtype = init_embeddings.dtype
    assert B * N < 2**31, "int32 edge_index requires B*N < 2**31"

    base_ei_np = _full_graph_edge_index(N, self_loop)  # static host-side setup
    M = base_ei_np.shape[1]

    # --- fields that are free / trivial outside the kernel --------------------
    x = init_embeddings.reshape(B * N, D)                     # metadata-only
    edge_attr = jnp.zeros((B * M, D), dtype=dtype)            # memset / fusable
    batch_vec = jnp.repeat(jnp.arange(B, dtype=jnp.int32), N)
    ptr = jnp.arange(B + 1, dtype=jnp.int32) * N

    if M == 0:
        # Degenerate case: N == 1 without self loops -> no edges.
        edge_index = jnp.zeros((2, 0), dtype=jnp.int32)
    elif M < 128:
        # Sub-128 lane dim would force masked vst partial stores and the
        # kernel-call overhead dominates; a fused XLA broadcast-add wins.
        base_ei = jnp.asarray(base_ei_np)
        offsets = (jnp.arange(B, dtype=jnp.int32) * N)[None, :, None]
        edge_index = (base_ei[:, None, :] + offsets).reshape(2, B * M)
    else:
        edge_index = _edge_index_pallas(base_ei_np, B, N, M)

    return {
        "x": x,
        "edge_index": edge_index,
        "edge_attr": edge_attr,
        "batch": batch_vec,
        "ptr": ptr,
        "num_graphs": B,
    }


def _reference_edge_index(B, N, self_loop):
    base_ref = _full_graph_edge_index(N, self_loop).astype(np.int64)
    return np.concatenate([base_ref + b * N for b in range(B)], axis=1)


if __name__ == "__main__":
    key = jax.random.PRNGKey(0)
    B, N, D = 2, 16, 32  # batch=2, num_nodes=16, embed_dim=32 (M >= 128 -> Pallas path)
    init_embeddings = jax.random.normal(key, (B, N, D), dtype=jnp.float32)

    # ---- main (non-self-loop) Pallas path -------------------------------------
    out = no_edge_embedding(init_embeddings, self_loop=False)
    jax.block_until_ready(out)

    M = N * (N - 1)
    ei_ref = _reference_edge_index(B, N, self_loop=False)

    assert out["x"].shape == (B * N, D)
    assert out["edge_index"].shape == (2, B * M)
    assert out["edge_attr"].shape == (B * M, D)
    assert out["batch"].shape == (B * N,)
    assert out["ptr"].shape == (B + 1,)
    assert np.allclose(
        np.asarray(out["x"]), np.asarray(init_embeddings).reshape(B * N, D)
    )
    assert np.array_equal(np.asarray(out["edge_index"], dtype=np.int64), ei_ref)
    assert float(np.abs(np.asarray(out["edge_attr"])).sum()) == 0.0
    assert np.array_equal(np.asarray(out["batch"]), np.repeat(np.arange(B), N))
    assert np.array_equal(np.asarray(out["ptr"]), np.arange(B + 1) * N)

    # ---- self-loop variant (M = N*N = 256, Pallas path) ------------------------
    out_sl = no_edge_embedding(init_embeddings, self_loop=True)
    jax.block_until_ready(out_sl)
    M_sl = N * N
    ei_sl_ref = _reference_edge_index(B, N, self_loop=True)
    assert out_sl["edge_index"].shape == (2, B * M_sl)
    assert np.array_equal(np.asarray(out_sl["edge_index"], dtype=np.int64), ei_sl_ref)

    # ---- small-M fallback path (N=8 -> M=56 < 128, pure-XLA broadcast-add) -----
    small_embeds = jax.random.normal(key, (B, 8, D), dtype=jnp.float32)
    out_small = no_edge_embedding(small_embeds, self_loop=False)
    jax.block_until_ready(out_small)
    M_small = 8 * 7
    ei_small_ref = _reference_edge_index(B, 8, self_loop=False)
    assert out_small["edge_index"].shape == (2, B * M_small)
    assert np.array_equal(
        np.asarray(out_small["edge_index"], dtype=np.int64), ei_small_ref
    )

    print("KERNEL_OK")
</pallas_src>

<mosaic_0001>
module attributes {stable_mosaic.version = 11 : i64} {
  func.func @_edge_index_kernel(%arg0: i32, %arg1: i32, %arg2: memref<2x1x240xi32, #tpu.memory_space<vmem>>, %arg3: memref<2x2x240xi32, #tpu.memory_space<vmem>>) attributes {dimension_semantics = [#tpu.dimension_semantics<parallel>, #tpu.dimension_semantics<parallel>], iteration_bounds = array<i64: 1, 1>, scalar_prefetch = 0 : i64, scratch_operands = 0 : i64, tpu.core_type = #tpu.core_type<tc>, window_params = [{transform_indices = @transform_0, window_bounds = array<i64: 2, 1, 240>}, {transform_indices = @transform_1, window_bounds = array<i64: 2, 2, 240>}]} {
    %c2_i32 = arith.constant 2 : i32
    %0 = arith.muli %arg1, %c2_i32 : i32
    %1 = tpu.iota {dimensions = array<i32: 1>} : vector<1x2x1xi32>
    %2 = vector.broadcast %0 : i32 to vector<1x2x1xi32>
    %3 = arith.addi %2, %1 : vector<1x2x1xi32>
    %c16_i32 = arith.constant 16 : i32
    %4 = vector.broadcast %c16_i32 : i32 to vector<1x2x1xi32>
    %5 = arith.muli %3, %4 : vector<1x2x1xi32>
    %c0 = arith.constant 0 : index
    %c0_0 = arith.constant 0 : index
    %c0_1 = arith.constant 0 : index
    %6 = vector.load %arg2[%c0, %c0_0, %c0_1] : memref<2x1x240xi32, #tpu.memory_space<vmem>>, vector<2x1x240xi32>
    %7 = vector.broadcast %6 : vector<2x1x240xi32> to vector<2x2x240xi32>
    %8 = vector.broadcast %5 : vector<1x2x1xi32> to vector<2x2x240xi32>
    %9 = arith.addi %7, %8 : vector<2x2x240xi32>
    %c0_2 = arith.constant 0 : index
    %c0_3 = arith.constant 0 : index
    %c0_4 = arith.constant 0 : index
    %10 = vector.load %arg3[%c0_2, %c0_3, %c0_4] : memref<2x2x240xi32, #tpu.memory_space<vmem>>, vector<2x2x240xi32>
    tpu.vector_store %arg3[%c0_2, %c0_3, %c0_4], %9 {strides = array<i32>} : memref<2x2x240xi32, #tpu.memory_space<vmem>>, vector<2x2x240xi32>,
    return
  }
  func.func @transform_0(%arg0: i32, %arg1: i32) -> (i32, i32, i32) {
    %c0_i32 = arith.constant 0 : i32
    %c0_i32_0 = arith.constant 0 : i32
    %c0_i32_1 = arith.constant 0 : i32
    return %c0_i32, %c0_i32_0, %arg0 : i32, i32, i32
  }
  func.func @transform_1(%arg0: i32, %arg1: i32) -> (i32, i32, i32) {
    %c0_i32 = arith.constant 0 : i32
    %c0_i32_0 = arith.constant 0 : i32
    return %c0_i32, %arg1, %arg0 : i32, i32, i32
  }
}

</mosaic_0001>

<llo_original>
// kernel: tpu_custom_call.1
$region0: #{tpu_custom_call.1}
  #allocation0 [shape = 'u32[]', space=smem, size = 0x4, offset = 0x4, fixed_abs, tag = 'smem constant byte address 0x4 - core index']
  #allocation1 [shape = 'u32[72,128]{1,0:T(1,128)}', space=vmem, size = 0x9000, scoped, tag = 'internal scratch']
  %s0 = inlined_call_operand.hbm [shape: s32[2,1,240], index: 0, kind: input, shape index: {}]
  %s1 = inlined_call_operand.hbm [shape: s32[2,2,240], index: 1, kind: output, shape index: {}]
  %s2 = sld [smem:[#allocation0]]
  $region18: #{tpu_custom_call.1} parent=0
    _
  %s4 = ssub.s32 1, %s2
  %s5 = scalar_select 0, %s4, %s2
  $region1: #{tpu_custom_call.1} parent=0
    #allocation2 [shape = 'u8[2048]{0}', space=vmem, size = 0x800, scoped, tag = 'input window, operand 0, single buffered']
    #allocation3 [shape = 's32[1]{0}', space=sflag, size = 0x4, scoped, tag = 'scoped memory for tpu_custom_call.1']
    #allocation4 [shape = 's32[1]{0}', space=sflag, size = 0x4, scoped, tag = 'scoped memory for tpu_custom_call.1']
    #allocation5 [shape = 'u8[4096]{0}', space=vmem, size = 0x1000, scoped, tag = 'output window, operand 0, single buffered']
    %6 = vsyncpa [#allocation3], 0
    %7 = vsyncpa [#allocation4], 0
    // Predicated region
    $region2: #{tpu_custom_call.1} parent=1 // pred_check
      _
    $region3: #{tpu_custom_call.1} parent=1 // pred_check_branch
      %9 = sbr.rel (0) target = $region5
    $region4: #{tpu_custom_call.1} parent=1 // pred_region
      %11 = vsyncadd [#allocation3], 0
      %s12 = sshll.u32 %s0, 4
      %s13 = int_to_ptr.hbm [resolvable:$true] %s12
      %s14 = sshll.u32 [#allocation2], 4
      %s15 = int_to_ptr.vmem [resolvable:$true] %s14
      %20 = dma.hbm_to_vmem [thread:$0]  %s13, 64, %s15, [#allocation3], 32, 32, 2
    $region5: #{tpu_custom_call.1} parent=1 // pred_fallthru
      _
    // Predicated region
    $region6: #{tpu_custom_call.1} parent=1 // pred_check
      _
    $region7: #{tpu_custom_call.1} parent=1 // pred_check_branch
      %22 = sbr.rel (0) target = $region9
    $region8: #{tpu_custom_call.1} parent=1 // pred_region
      %24 = dma.done [#allocation3], 64
    $region9: #{tpu_custom_call.1} parent=1 // pred_fallthru
      _
    %s25 = smul.u32 0, 2
    %v26 = vlaneseq
    %v27 = vshrl.u32 %v26, 7
    %v28 = vstv %s25
    %v29 = vadd.s32 %v28, %v27
    %v30 = vmul.u32 %v29, 16
    %v31 = vld [vmem:[#allocation2] sm:$0x3]
    %v32 = vld [vmem:[#allocation2 + $0x2] sm:$0x3]
    %v33 = vperm.slane %v31, 0
    %v34 = vperm.slane %v31, 1
    %v35 = vperm.slane %v32, 0
    %v36 = vperm.slane %v32, 1
    %v37 = vadd.s32 %v33, %v30
    %v38 = vadd.s32 %v34, %v30
    %v39 = vadd.s32 %v35, %v30
    %v40 = vadd.s32 %v36, %v30
    %v41 = vrot.slane %v38, 6
    %v42 = vrot.slane %v40, 6
    %vm43 = vcmask 1041408
    %v44 = vsel %vm43, %v37, %v41
    %v45 = vsel %vm43, %v39, %v42
    %vm46 = vcmask 912386
    %vm47 = vmor %vm46, %vm43
    %48 = vst.msk [vmem:[#allocation5] sm:$0xf] %vm47, %v44
    %49 = vst.msk [vmem:[#allocation5 + $0x4] sm:$0xf] %vm47, %v45
    // Predicated region
    $region10: #{tpu_custom_call.1} parent=1 // pred_check
      _
    $region11: #{tpu_custom_call.1} parent=1 // pred_check_branch
      %51 = sbr.rel (0) target = $region13
    $region12: #{tpu_custom_call.1} parent=1 // pred_region
      %53 = vsyncadd [#allocation4], 0
      %s54 = sshll.u32 [#allocation5], 4
      %s55 = int_to_ptr.vmem [resolvable:$true] %s54
      %s56 = sshll.u32 %s1, 4
      %s57 = int_to_ptr.hbm [resolvable:$true] %s56
      %62 = dma.vmem_to_hbm [thread:$0]  %s55, 128, %s57, [#allocation4], 64, 64, 4
    $region13: #{tpu_custom_call.1} parent=1 // pred_fallthru
      _
    // Predicated region
    $region14: #{tpu_custom_call.1} parent=1 // pred_check
      _
    $region15: #{tpu_custom_call.1} parent=1 // pred_check_branch
      %64 = sbr.rel (0) target = $region17
    $region16: #{tpu_custom_call.1} parent=1 // pred_region
      %66 = dma.done [#allocation4], 128
    $region17: #{tpu_custom_call.1} parent=1 // pred_fallthru
      _
    %67 = vsyncpa [#allocation3], 1
    %68 = vsyncpa [#allocation4], 1

</llo_original>
